<compile_context>
chip_gen: v6e
topology: v6e:2x2x1
jax: 0.10.0
libtpu: 0.0.40
codegen_flags: <defaults>
</compile_context>

<pallas_src>
import jax
import jax.numpy as jnp
from jax.experimental import pallas as pl
from jax.experimental.pallas import tpu as pltpu


def _mm_bias_add_kernel(x2_ref, x1_ref, inp1_ref, inp2_ref, out_ref, v1_ref):
    b = pl.program_id(2)

    # Matmul tile: computed once per (i, j) output tile, reused across the
    # innermost batch axis (scratch persists across grid steps).
    @pl.when(b == 0)
    def _():
        v1_ref[...] = jnp.dot(
            x2_ref[...], x1_ref[...], preferred_element_type=jnp.float32
        )

    # Lane-dense 2-D elementwise adds (batch dim is squeezed out of the block).
    # Add the streaming operands first, then the resident matmul tile.
    out_ref[...] = ((inp1_ref[...] + inp2_ref[...]) + v1_ref[...]).astype(
        out_ref.dtype
    )


def _pick_tile(dim, cap, align):
    """Largest tile <= cap that is a multiple of `align` and divides `dim`;
    falls back to the full dim (a full-extent block is always legal)."""
    if dim <= cap:
        return dim
    t = (cap // align) * align
    while t >= align:
        if dim % t == 0:
            return t
        t -= align
    return dim


def model_forward(x1, x2, inp1, inp2, *, tm=None, tn=None):
    """x1: (K, N), x2: (M, K), inp1/inp2: (B, M, N) -> (B, M, N)"""
    K, N = x1.shape
    M, K2 = x2.shape
    assert K == K2
    B, Mb, Nb = inp1.shape
    assert (Mb, Nb) == (M, N) and inp2.shape == inp1.shape

    # Tile sizes: sublane-aligned M tile, lane-dense N tile (multiple of 128).
    if tm is None:
        tm = _pick_tile(M, cap=256, align=8)
    if tn is None:
        tn = _pick_tile(N, cap=512, align=128)
    assert M % tm == 0 and N % tn == 0
    assert tm == M or tm % 8 == 0
    assert tn == N or tn % 128 == 0

    grid = (M // tm, N // tn, B)

    # Explicit VMEM budget: double-buffered operand tiles + f32 scratch +
    # headroom, capped well inside v7x's 64 MiB physical VMEM.
    itemsize = 4
    tile_bytes = itemsize * (tm * K + K * tn + 3 * tm * tn)
    vmem_limit = int(min(max(4 * tile_bytes + 4 * tm * tn + (2 << 20), 16 << 20),
                         48 << 20))

    return pl.pallas_call(
        _mm_bias_add_kernel,
        out_shape=jax.ShapeDtypeStruct((B, M, N), jnp.float32),
        grid=grid,
        in_specs=[
            pl.BlockSpec((tm, K), lambda i, j, b: (i, 0)),            # x2 row panel
            pl.BlockSpec((K, tn), lambda i, j, b: (0, j)),            # x1 col panel
            pl.BlockSpec((None, tm, tn), lambda i, j, b: (b, i, j)),  # inp1 (2-D view)
            pl.BlockSpec((None, tm, tn), lambda i, j, b: (b, i, j)),  # inp2 (2-D view)
        ],
        out_specs=pl.BlockSpec((None, tm, tn), lambda i, j, b: (b, i, j)),
        scratch_shapes=[pltpu.VMEM((tm, tn), jnp.float32)],           # resident v1 tile
        compiler_params=pltpu.CompilerParams(
            dimension_semantics=("parallel", "parallel", "arbitrary"),
            vmem_limit_bytes=vmem_limit,
        ),
    )(x2, x1, inp1, inp2)


if __name__ == "__main__":
    # Small, tile-friendly shapes consistent with the module's forward.
    B, M, K, N = 2, 16, 32, 256

    key = jax.random.PRNGKey(0)
    k1, k2, k3, k4 = jax.random.split(key, 4)
    x1 = jax.random.normal(k1, (K, N), dtype=jnp.float32)
    x2 = jax.random.normal(k2, (M, K), dtype=jnp.float32)
    inp1 = jax.random.normal(k3, (B, M, N), dtype=jnp.float32)
    inp2 = jax.random.normal(k4, (B, M, N), dtype=jnp.float32)

    # tm=8, tn=128 -> grid (2, 2, 2): exercises the tiled/pipelined path and
    # the matmul-reuse-across-batch logic even at these small demo shapes.
    out = model_forward(x1, x2, inp1, inp2, tm=8, tn=128)
    jax.block_until_ready(out)

    # Reference check in plain JAX.
    ref = jnp.dot(x2, x1)[None, :, :] + inp1 + inp2
    assert jnp.allclose(out, ref, atol=1e-4, rtol=1e-4), "mismatch vs reference"

    print("KERNEL_OK")
</pallas_src>

<mosaic_0001>
module attributes {stable_mosaic.version = 11 : i64} {
  func.func @_mm_bias_add_kernel(%arg0: i32, %arg1: i32, %arg2: i32, %arg3: memref<8x32xf32, #tpu.memory_space<vmem>>, %arg4: memref<32x128xf32, #tpu.memory_space<vmem>>, %arg5: memref<1x8x128xf32, #tpu.memory_space<vmem>>, %arg6: memref<1x8x128xf32, #tpu.memory_space<vmem>>, %arg7: memref<1x8x128xf32, #tpu.memory_space<vmem>>, %arg8: memref<8x128xf32, #tpu.memory_space<vmem>>) attributes {dimension_semantics = [#tpu.dimension_semantics<parallel>, #tpu.dimension_semantics<parallel>, #tpu.dimension_semantics<arbitrary>], iteration_bounds = array<i64: 2, 2, 2>, scalar_prefetch = 0 : i64, scratch_operands = 1 : i64, tpu.core_type = #tpu.core_type<tc>, window_params = [{transform_indices = @transform_0, window_bounds = array<i64: 8, 32>}, {transform_indices = @transform_1, window_bounds = array<i64: 32, 128>}, {transform_indices = @transform_2, window_bounds = array<i64: 1, 8, 128>}, {transform_indices = @transform_3, window_bounds = array<i64: 1, 8, 128>}, {transform_indices = @transform_4, window_bounds = array<i64: 1, 8, 128>}]} {
    %c0_i32 = arith.constant 0 : i32
    %0 = arith.cmpi eq, %arg2, %c0_i32 : i32
    %1 = arith.extui %0 : i1 to i32
    %c0_i32_0 = arith.constant 0 : i32
    %2 = arith.cmpi ne, %1, %c0_i32_0 : i32
    scf.if %2 {
      %c0_11 = arith.constant 0 : index
      %c0_12 = arith.constant 0 : index
      %13 = vector.load %arg3[%c0_11, %c0_12] : memref<8x32xf32, #tpu.memory_space<vmem>>, vector<8x32xf32>
      %c0_13 = arith.constant 0 : index
      %c0_14 = arith.constant 0 : index
      %14 = vector.load %arg4[%c0_13, %c0_14] : memref<32x128xf32, #tpu.memory_space<vmem>>, vector<32x128xf32>
      %cst = arith.constant dense<0.000000e+00> : vector<8x128xf32>
      %15 = tpu.matmul %13, %14, %cst {dimension_numbers = #tpu.dot_dimension_numbers<[1], [0], [0], [1], [0, 0, 1, 1], [], []>} : vector<8x32xf32>, vector<32x128xf32>, vector<8x128xf32> -> vector<8x128xf32>
      %c0_15 = arith.constant 0 : index
      %c0_16 = arith.constant 0 : index
      %16 = vector.load %arg8[%c0_15, %c0_16] : memref<8x128xf32, #tpu.memory_space<vmem>>, vector<8x128xf32>
      tpu.vector_store %arg8[%c0_15, %c0_16], %15 {strides = array<i32>} : memref<8x128xf32, #tpu.memory_space<vmem>>, vector<8x128xf32>,
    } else {
    }
    %c0 = arith.constant 0 : index
    %c0_1 = arith.constant 0 : index
    %c0_2 = arith.constant 0 : index
    %3 = vector.load %arg5[%c0, %c0_1, %c0_2] : memref<1x8x128xf32, #tpu.memory_space<vmem>>, vector<1x8x128xf32>
    %4 = vector.shape_cast %3 : vector<1x8x128xf32> to vector<8x128xf32>
    %c0_3 = arith.constant 0 : index
    %c0_4 = arith.constant 0 : index
    %c0_5 = arith.constant 0 : index
    %5 = vector.load %arg6[%c0_3, %c0_4, %c0_5] : memref<1x8x128xf32, #tpu.memory_space<vmem>>, vector<1x8x128xf32>
    %6 = vector.shape_cast %5 : vector<1x8x128xf32> to vector<8x128xf32>
    %7 = arith.addf %4, %6 : vector<8x128xf32>
    %c0_6 = arith.constant 0 : index
    %c0_7 = arith.constant 0 : index
    %8 = vector.load %arg8[%c0_6, %c0_7] : memref<8x128xf32, #tpu.memory_space<vmem>>, vector<8x128xf32>
    %9 = arith.addf %7, %8 : vector<8x128xf32>
    %c0_8 = arith.constant 0 : index
    %c0_9 = arith.constant 0 : index
    %c0_10 = arith.constant 0 : index
    %10 = vector.load %arg7[%c0_8, %c0_9, %c0_10] : memref<1x8x128xf32, #tpu.memory_space<vmem>>, vector<1x8x128xf32>
    %11 = vector.shape_cast %10 : vector<1x8x128xf32> to vector<8x128xf32>
    %12 = vector.shape_cast %9 : vector<8x128xf32> to vector<1x8x128xf32>
    tpu.vector_store %arg7[%c0_8, %c0_9, %c0_10], %12 {strides = array<i32>} : memref<1x8x128xf32, #tpu.memory_space<vmem>>, vector<1x8x128xf32>,
    return
  }
  func.func @transform_0(%arg0: i32, %arg1: i32, %arg2: i32) -> (i32, i32) {
    %c0_i32 = arith.constant 0 : i32
    %c0_i32_0 = arith.constant 0 : i32
    return %arg0, %c0_i32 : i32, i32
  }
  func.func @transform_1(%arg0: i32, %arg1: i32, %arg2: i32) -> (i32, i32) {
    %c0_i32 = arith.constant 0 : i32
    %c0_i32_0 = arith.constant 0 : i32
    return %c0_i32, %arg1 : i32, i32
  }
  func.func @transform_2(%arg0: i32, %arg1: i32, %arg2: i32) -> (i32, i32, i32) {
    %c0_i32 = arith.constant 0 : i32
    return %arg2, %arg0, %arg1 : i32, i32, i32
  }
  func.func @transform_3(%arg0: i32, %arg1: i32, %arg2: i32) -> (i32, i32, i32) {
    %c0_i32 = arith.constant 0 : i32
    return %arg2, %arg0, %arg1 : i32, i32, i32
  }
  func.func @transform_4(%arg0: i32, %arg1: i32, %arg2: i32) -> (i32, i32, i32) {
    %c0_i32 = arith.constant 0 : i32
    return %arg2, %arg0, %arg1 : i32, i32, i32
  }
}

</mosaic_0001>

<llo_original>
// kernel: tpu_custom_call.1
$region0: #{tpu_custom_call.1}
  #allocation0 [shape = 'u32[]', space=smem, size = 0x4, offset = 0x4, fixed_abs, tag = 'smem constant byte address 0x4 - core index']
  #allocation1 [shape = 'u32[144,128]{1,0:T(1,128)}', space=vmem, size = 0x12000, scoped, tag = 'internal scratch']
  #allocation2 [shape = 'f32[8,128]{1,0:T(8,128)}', space=vmem, size = 0x1000, scoped, tag = 'scratch operand']
  %s0 = inlined_call_operand.hbm [shape: f32[16,32], index: 0, kind: input, shape index: {}]
  %s1 = inlined_call_operand.hbm [shape: f32[32,256], index: 1, kind: input, shape index: {}]
  %s2 = inlined_call_operand.hbm [shape: f32[2,16,256], index: 2, kind: input, shape index: {}]
  %s3 = inlined_call_operand.hbm [shape: f32[2,16,256], index: 3, kind: input, shape index: {}]
  %s4 = inlined_call_operand.hbm [shape: f32[2,16,256], index: 4, kind: output, shape index: {}]
  %s5 = sld [smem:[#allocation0]]
  $region69: #{tpu_custom_call.1} parent=0
    _
  %s7 = ssub.s32 1, %s5
  %s8 = scalar_select 0, %s7, %s5
  $region1: #{tpu_custom_call.1} parent=0
    #allocation3 [shape = 'u8[8192]{0}', space=vmem, size = 0x2000, scoped, tag = 'input window, operand 0']
    #allocation4 [shape = 's32[2]{0}', space=sflag, size = 0x8, scoped, tag = 'scoped memory for tpu_custom_call.1']
    #allocation5 [shape = 's32[2]{0}', space=sflag, size = 0x8, scoped, tag = 'scoped memory for tpu_custom_call.1']
    #allocation6 [shape = 'u8[32768]{0}', space=vmem, size = 0x8000, scoped, tag = 'input window, operand 1']
    #allocation7 [shape = 's32[2]{0}', space=sflag, size = 0x8, scoped, tag = 'scoped memory for tpu_custom_call.1']
    #allocation8 [shape = 'u8[8192]{0}', space=vmem, size = 0x2000, scoped, tag = 'input window, operand 2']
    #allocation9 [shape = 'u8[8192]{0}', space=vmem, size = 0x2000, scoped, tag = 'input window, operand 3']
    #allocation10 [shape = 's32[2]{0}', space=sflag, size = 0x8, scoped, tag = 'scoped memory for tpu_custom_call.1']
    #allocation11 [shape = 'u8[8192]{0}', space=vmem, size = 0x2000, scoped, tag = 'output window, operand 0']
    %9 = vsyncpa [#allocation4], 0
    %s10 = scalar_lea.sflag [#allocation4], 1
    %11 = vsyncpa %s10, 0
    %12 = vsyncpa [#allocation7], 0
    %s13 = scalar_lea.sflag [#allocation7], 1
    %14 = vsyncpa %s13, 0
    %15 = vsyncpa [#allocation10], 0
    %s16 = scalar_lea.sflag [#allocation10], 1
    %17 = vsyncpa %s16, 0
    %18 = vsyncpa [#allocation5], 0
    %s19 = scalar_lea.sflag [#allocation5], 1
    %20 = vsyncpa %s19, 0
    loop: start=0, step=1, limit=10
    $region2: #{tpu_custom_call.1} parent=1 // loop_pre_header
      _
    $region3: #{tpu_custom_call.1} parent=1 // loop_header
      %s22 = sphi 0, %s26
      %p23 = scmp.ge.s32.totalorder %s22, 10
      %s29 = sphi 0, %s48
      %s30 = sphi 0, %s44
      %s31 = sphi 0, %s40
      %s32 = sphi 0, %s29
      %s33 = sphi 0, %s30
      %s34 = sphi 0, %s31
      %s35 = sphi 0, %s32
      %s36 = sphi 0, %s33
      %s37 = sphi 0, %s34
      %s51 = sphi 0, %s53
      %s54 = sphi 0, %s51
      %s55 = sphi 0, %s54
      %s71 = sphi 0, %s55
      %s77 = sphi 0, %s79
      %s80 = sphi 0, %s77
      %s81 = sphi 0, %s80
      %s97 = sphi 0, %s81
      %s107 = sphi 0, %s109
      %s110 = sphi 0, %s107
      %s111 = sphi 0, %s110
      %s127 = sphi 0, %s111
      %s137 = sphi 0, %s139
      %s140 = sphi 0, %s137
      %s141 = sphi 0, %s140
      %s157 = sphi 0, %s141
      %s167 = sphi 0, %s169
      %s170 = sphi 0, %s167
      %s171 = sphi 0, %s170
      %s187 = sphi 0, %s171
    $region4: #{tpu_custom_call.1} parent=1 // loop_header_branch
      %25 = sbr.rel (%p23) target = $region8
    $region5: #{tpu_custom_call.1} parent=1 // loop_body
      %s27 = ssub.s32 %s22, 1
      %s28 = ssub.s32 %s22, 2
      %s38 = sadd.s32 1, %s31
      %p39 = scmp.ge.s32.totalorder %s38, 2
      %s40 = scalar_select %p39, 0, %s38
      %s41 = sadd.s32 1, %s30
      %s42 = scalar_select %p39, %s41, %s30
      %p43 = scmp.ge.s32.totalorder %s42, 2
      %s44 = scalar_select %p43, 0, %s42
      %s45 = sadd.s32 1, %s29
      %s46 = scalar_select %p43, %s45, %s29
      %p47 = scmp.ge.s32.totalorder %s46, 2
      %s48 = scalar_select %p47, 0, %s46
      %s49 = ssub.s32 %s29, %s48
      %p50 = scmp.eq.s32.totalorder %s49, 0
      %s52 = sadd.s32 %s51, 1
      %s53 = scalar_select %p50, %s51, %s52
      %p56 = pneg %p50
      %p57 = scmp.eq.s32.totalorder %s22, 7
      %p58 = por %p56, %p57
      %p59 = scmp.ne.s32.totalorder %s51, %s54
      %p60 = scmp.eq.s32.totalorder %s22, 0
      %p61 = por %p59, %p60
      %p62 = scmp.ne.s32.totalorder %s51, %s54
      %p63 = scmp.eq.s32.totalorder %s27, 7
      %p64 = por %p62, %p63
      %p65 = scmp.ne.s32.totalorder %s54, %s55
      %p66 = scmp.eq.s32.totalorder %s27, 0
      %p67 = por %p65, %p66
      %p68 = scmp.ne.s32.totalorder %s54, %s55
      %p69 = scmp.eq.s32.totalorder %s28, 7
      %p70 = por %p68, %p69
      %p72 = scmp.ne.s32.totalorder %s55, %s71
      %p73 = scmp.eq.s32.totalorder %s28, 0
      %p74 = por %p72, %p73
      %s75 = ssub.s32 %s30, %s44
      %p76 = scmp.eq.s32.totalorder %s75, 0
      %s78 = sadd.s32 %s77, 1
      %s79 = scalar_select %p76, %s77, %s78
      %p82 = pneg %p76
      %p83 = scmp.eq.s32.totalorder %s22, 7
      %p84 = por %p82, %p83
      %p85 = scmp.ne.s32.totalorder %s77, %s80
      %p86 = scmp.eq.s32.totalorder %s22, 0
      %p87 = por %p85, %p86
      %p88 = scmp.ne.s32.totalorder %s77, %s80
      %p89 = scmp.eq.s32.totalorder %s27, 7
      %p90 = por %p88, %p89
      %p91 = scmp.ne.s32.totalorder %s80, %s81
      %p92 = scmp.eq.s32.totalorder %s27, 0
      %p93 = por %p91, %p92
      %p94 = scmp.ne.s32.totalorder %s80, %s81
      %p95 = scmp.eq.s32.totalorder %s28, 7
      %p96 = por %p94, %p95
      %p98 = scmp.ne.s32.totalorder %s81, %s97
      %p99 = scmp.eq.s32.totalorder %s28, 0
      %p100 = por %p98, %p99
      %s101 = ssub.s32 %s31, %s40
      %s102 = ssub.s32 %s29, %s48
      %s103 = sor.u32 %s101, %s102
      %s104 = ssub.s32 %s30, %s44
      %s105 = sor.u32 %s103, %s104
      %p106 = scmp.eq.s32.totalorder %s105, 0
      %s108 = sadd.s32 %s107, 1
      %s109 = scalar_select %p106, %s107, %s108
      %p112 = pneg %p106
      %p113 = scmp.eq.s32.totalorder %s22, 7
      %p114 = por %p112, %p113
      %p115 = scmp.ne.s32.totalorder %s107, %s110
      %p116 = scmp.eq.s32.totalorder %s22, 0
      %p117 = por %p115, %p116
      %p118 = scmp.ne.s32.totalorder %s107, %s110
      %p119 = scmp.eq.s32.totalorder %s27, 7
      %p120 = por %p118, %p119
      %p121 = scmp.ne.s32.totalorder %s110, %s111
      %p122 = scmp.eq.s32.totalorder %s27, 0
      %p123 = por %p121, %p122
      %p124 = scmp.ne.s32.totalorder %s110, %s111
      %p125 = scmp.eq.s32.totalorder %s28, 7
      %p126 = por %p124, %p125
      %p128 = scmp.ne.s32.totalorder %s111, %s127
      %p129 = scmp.eq.s32.totalorder %s28, 0
      %p130 = por %p128, %p129
      %s131 = ssub.s32 %s31, %s40
      %s132 = ssub.s32 %s29, %s48
      %s133 = sor.u32 %s131, %s132
      %s134 = ssub.s32 %s30, %s44
      %s135 = sor.u32 %s133, %s134
      %p136 = scmp.eq.s32.totalorder %s135, 0
      %s138 = sadd.s32 %s137, 1
      %s139 = scalar_select %p136, %s137, %s138
      %p142 = pneg %p136
      %p143 = scmp.eq.s32.totalorder %s22, 7
      %p144 = por %p142, %p143
      %p145 = scmp.ne.s32.totalorder %s137, %s140
      %p146 = scmp.eq.s32.totalorder %s22, 0
      %p147 = por %p145, %p146
      %p148 = scmp.ne.s32.totalorder %s137, %s140
      %p149 = scmp.eq.s32.totalorder %s27, 7
      %p150 = por %p148, %p149
      %p151 = scmp.ne.s32.totalorder %s140, %s141
      %p152 = scmp.eq.s32.totalorder %s27, 0
      %p153 = por %p151, %p152
      %p154 = scmp.ne.s32.totalorder %s140, %s141
      %p155 = scmp.eq.s32.totalorder %s28, 7
      %p156 = por %p154, %p155
      %p158 = scmp.ne.s32.totalorder %s141, %s157
      %p159 = scmp.eq.s32.totalorder %s28, 0
      %p160 = por %p158, %p159
      %s161 = ssub.s32 %s31, %s40
      %s162 = ssub.s32 %s29, %s48
      %s163 = sor.u32 %s161, %s162
      %s164 = ssub.s32 %s30, %s44
      %s165 = sor.u32 %s163, %s164
      %p166 = scmp.eq.s32.totalorder %s165, 0
      %s168 = sadd.s32 %s167, 1
      %s169 = scalar_select %p166, %s167, %s168
      %p172 = pneg %p166
      %p173 = scmp.eq.s32.totalorder %s22, 7
      %p174 = por %p172, %p173
      %p175 = scmp.ne.s32.totalorder %s167, %s170
      %p176 = scmp.eq.s32.totalorder %s22, 0
      %p177 = por %p175, %p176
      %p178 = scmp.ne.s32.totalorder %s167, %s170
      %p179 = scmp.eq.s32.totalorder %s27, 7
      %p180 = por %p178, %p179
      %p181 = scmp.ne.s32.totalorder %s170, %s171
      %p182 = scmp.eq.s32.totalorder %s27, 0
      %p183 = por %p181, %p182
      %p184 = scmp.ne.s32.totalorder %s170, %s171
      %p185 = scmp.eq.s32.totalorder %s28, 7
      %p186 = por %p184, %p185
      %p188 = scmp.ne.s32.totalorder %s171, %s187
      %p189 = scmp.eq.s32.totalorder %s28, 0
      %p190 = por %p188, %p189
      %p191 = scmp.le.s32.totalorder 1, %s22
      %p192 = scmp.lt.s32.totalorder %s22, 9
      %p193 = pnand %p191, %p192
      %p194 = pneg %p193
      // Predicated region
      $region9: #{tpu_custom_call.1} parent=5 // pred_check
        _
      $region10: #{tpu_custom_call.1} parent=5 // pred_check_branch
        %196 = sbr.rel (%p193) target = $region12
      $region11: #{tpu_custom_call.1} parent=5 // pred_region
        %s197 = ssub.s32 %s22, 1
      $region12: #{tpu_custom_call.1} parent=5 // pred_fallthru
        _
      %p198 = scmp.lt.s32.totalorder %s22, 8
      // Predicated region
      $region13: #{tpu_custom_call.1} parent=5 // pred_check
        %p199 = pneg %p198
      $region14: #{tpu_custom_call.1} parent=5 // pred_check_branch
        %201 = sbr.rel (%p199) target = $region16
      $region15: #{tpu_custom_call.1} parent=5 // pred_region
        // Predicated region
        $region17: #{tpu_custom_call.1} parent=15 // pred_check
          %p202 = pneg %p61
        $region18: #{tpu_custom_call.1} parent=15 // pred_check_branch
          %204 = sbr.rel (%p202) target = $region20
        $region19: #{tpu_custom_call.1} parent=15 // pred_region
          %s205 = sand.u32 %s51, 1
          %s206 = scalar_lea.sflag [#allocation4], %s205
          %s207 = sand.u32 %s51, 1
          %s208 = smul.addr %s207, 8
          %s209 = scalar_lea.vmem [#allocation3], %s208
          %s211 = ssub.s32 128, 128
          %212 = vsyncadd %s206, %s211
          %s213 = smul.addr %s29, 128
          %s214 = scalar_lea.hbm %s0, %s213
          %s216 = sshll.u32 %s209, 4
          %s217 = int_to_ptr.vmem [resolvable:$true] %s216
          %219 = dma.hbm_to_vmem [thread:$0]  %s214, 128, %s217, %s206
        $region20: #{tpu_custom_call.1} parent=15 // pred_fallthru
          _
        // Predicated region
        $region21: #{tpu_custom_call.1} parent=15 // pred_check
          %p220 = pneg %p87
        $region22: #{tpu_custom_call.1} parent=15 // pred_check_branch
          %222 = sbr.rel (%p220) target = $region24
        $region23: #{tpu_custom_call.1} parent=15 // pred_region
          %s223 = sand.u32 %s22, 1
          %s224 = scalar_lea.sflag [#allocation7], %s223
          %s225 = sand.u32 %s77, 1
          %s226 = smul.addr %s225, 32
          %s227 = scalar_lea.vmem [#allocation6], %s226
          %s229 = ssub.s32 512, 512
          %230 = vsyncadd %s224, %s229
          %s231 = smul.addr %s30, 128
          %s232 = scalar_lea.hbm %s1, %s231
          %s233 = sshll.u32 %s227, 4
          %s234 = int_to_ptr.vmem [resolvable:$true] %s233
          %239 = dma.hbm_to_vmem [thread:$0]  %s232, 512, %s234, %s224, 256, 128, 8
        $region24: #{tpu_custom_call.1} parent=15 // pred_fallthru
          _
        // Predicated region
        $region25: #{tpu_custom_call.1} parent=15 // pred_check
          %p240 = pneg %p117
        $region26: #{tpu_custom_call.1} parent=15 // pred_check_branch
          %242 = sbr.rel (%p240) target = $region28
        $region27: #{tpu_custom_call.1} parent=15 // pred_region
          %s243 = sand.u32 %s22, 1
          %s244 = scalar_lea.sflag [#allocation7], %s243
          %s245 = sand.u32 %s107, 1
          %s246 = smul.addr %s245, 8
          %s247 = scalar_lea.vmem [#allocation8], %s246
          %s249 = ssub.s32 128, 128
          %250 = vsyncadd %s244, %s249
          %s251 = smul.addr %s29, 2
          %s252 = sadd.s32 %s30, %s251
          %s253 = smul.addr %s31, 4
          %s254 = sadd.s32 %s252, %s253
          %s255 = smul.addr %s254, 128
          %s256 = scalar_lea.hbm %s2, %s255
          %s258 = sshll.u32 %s247, 4
          %s259 = int_to_ptr.vmem [resolvable:$true] %s258
          %261 = dma.hbm_to_vmem [thread:$0]  %s256, 128, %s259, %s244
        $region28: #{tpu_custom_call.1} parent=15 // pred_fallthru
          _
        // Predicated region
        $region29: #{tpu_custom_call.1} parent=15 // pred_check
          %p262 = pneg %p147
        $region30: #{tpu_custom_call.1} parent=15 // pred_check_branch
          %264 = sbr.rel (%p262) target = $region32
        $region31: #{tpu_custom_call.1} parent=15 // pred_region
          %s265 = sand.u32 %s137, 1
          %s266 = scalar_lea.sflag [#allocation10], %s265
          %s267 = sand.u32 %s137, 1
          %s268 = smul.addr %s267, 8
          %s269 = scalar_lea.vmem [#allocation9], %s268
          %s271 = ssub.s32 128, 128
          %272 = vsyncadd %s266, %s271
          %s273 = smul.addr %s29, 2
          %s274 = sadd.s32 %s30, %s273
          %s275 = smul.addr %s31, 4
          %s276 = sadd.s32 %s274, %s275
          %s277 = smul.addr %s276, 128
          %s278 = scalar_lea.hbm %s3, %s277
          %s280 = sshll.u32 %s269, 4
          %s281 = int_to_ptr.vmem [resolvable:$true] %s280
          %283 = dma.hbm_to_vmem [thread:$0]  %s278, 128, %s281, %s266
        $region32: #{tpu_custom_call.1} parent=15 // pred_fallthru
          _
      $region16: #{tpu_custom_call.1} parent=5 // pred_fallthru
        _
      %p284 = scmp.le.s32.totalorder 1, %s22
      %p285 = scmp.lt.s32.totalorder %s22, 9
      %p286 = pnand %p284, %p285
      %p287 = pneg %p286
      // Predicated region
      $region33: #{tpu_custom_call.1} parent=5 // pred_check
        _
      $region34: #{tpu_custom_call.1} parent=5 // pred_check_branch
        %289 = sbr.rel (%p286) target = $region36
      $region35: #{tpu_custom_call.1} parent=5 // pred_region
        %s290 = ssub.s32 %s22, 1
        %s291 = sand.u32 %s54, 1
        %s292 = scalar_lea.sflag [#allocation4], %s291
        %s293 = sand.u32 %s54, 1
        %s294 = smul.addr %s293, 8
        %s295 = scalar_lea.vmem [#allocation3], %s294
        // Predicated region
        $region37: #{tpu_custom_call.1} parent=35 // pred_check
          %p296 = pneg %p67
        $region38: #{tpu_custom_call.1} parent=35 // pred_check_branch
          %298 = sbr.rel (%p296) target = $region40
        $region39: #{tpu_custom_call.1} parent=35 // pred_region
          %299 = dma.done %s292, 128
        $region40: #{tpu_custom_call.1} parent=35 // pred_fallthru
          _
        %s300 = sand.u32 %s27, 1
        %s301 = scalar_lea.sflag [#allocation7], %s300
        %s302 = sand.u32 %s80, 1
        %s303 = smul.addr %s302, 32
        %s304 = scalar_lea.vmem [#allocation6], %s303
        // Predicated region
        $region41: #{tpu_custom_call.1} parent=35 // pred_check
          %p305 = pneg %p93
        $region42: #{tpu_custom_call.1} parent=35 // pred_check_branch
          %307 = sbr.rel (%p305) target = $region44
        $region43: #{tpu_custom_call.1} parent=35 // pred_region
          %308 = dma.done %s301, 512
        $region44: #{tpu_custom_call.1} parent=35 // pred_fallthru
          _
        %s309 = sand.u32 %s27, 1
        %s310 = scalar_lea.sflag [#allocation7], %s309
        %s311 = sand.u32 %s110, 1
        %s312 = smul.addr %s311, 8
        %s313 = scalar_lea.vmem [#allocation8], %s312
        // Predicated region
        $region45: #{tpu_custom_call.1} parent=35 // pred_check
          %p314 = pneg %p123
        $region46: #{tpu_custom_call.1} parent=35 // pred_check_branch
          %316 = sbr.rel (%p314) target = $region48
        $region47: #{tpu_custom_call.1} parent=35 // pred_region
          %317 = dma.done %s310, 128
        $region48: #{tpu_custom_call.1} parent=35 // pred_fallthru
          _
        %s318 = sand.u32 %s140, 1
        %s319 = scalar_lea.sflag [#allocation10], %s318
        %s320 = sand.u32 %s140, 1
        %s321 = smul.addr %s320, 8
        %s322 = scalar_lea.vmem [#allocation9], %s321
        // Predicated region
        $region49: #{tpu_custom_call.1} parent=35 // pred_check
          %p323 = pneg %p153
        $region50: #{tpu_custom_call.1} parent=35 // pred_check_branch
          %325 = sbr.rel (%p323) target = $region52
        $region51: #{tpu_custom_call.1} parent=35 // pred_region
          %326 = dma.done %s319, 128
        $region52: #{tpu_custom_call.1} parent=35 // pred_fallthru
          _
        %s327 = sand.u32 %s54, 1
        %s328 = scalar_lea.sflag [#allocation4], %s327
        %s329 = sand.u32 %s54, 1
        %s330 = smul.addr %s329, 8
        %s331 = scalar_lea.vmem [#allocation3], %s330
        %p332 = pneg %p67
        %p333 = pneg %p64
        %s334 = sand.u32 %s27, 1
        %s335 = scalar_lea.sflag [#allocation7], %s334
        %s336 = sand.u32 %s80, 1
        %s337 = smul.addr %s336, 32
        %s338 = scalar_lea.vmem [#allocation6], %s337
        %p339 = pneg %p93
        %p340 = pneg %p90
        %s341 = sand.u32 %s27, 1
        %s342 = scalar_lea.sflag [#allocation7], %s341
        %s343 = sand.u32 %s110, 1
        %s344 = smul.addr %s343, 8
        %s345 = scalar_lea.vmem [#allocation8], %s344
        %p346 = pneg %p123
        %p347 = pneg %p120
        %s348 = sand.u32 %s140, 1
        %s349 = scalar_lea.sflag [#allocation10], %s348
        %s350 = sand.u32 %s140, 1
        %s351 = smul.addr %s350, 8
        %s352 = scalar_lea.vmem [#allocation9], %s351
        %p353 = pneg %p153
        %p354 = pneg %p150
        %p355 = pneg %p183
        %p356 = pneg %p180
        %s357 = sand.u32 %s170, 1
        %s358 = scalar_lea.sflag [#allocation5], %s357
        %s359 = sand.u32 %s170, 1
        %s360 = smul.addr %s359, 8
        %s361 = scalar_lea.vmem [#allocation11], %s360
        %p362 = scmp.eq.s32.totalorder %s34, 0
        // Predicated region
        $region53: #{tpu_custom_call.1} parent=35 // pred_check
          %p363 = pneg %p362
        $region54: #{tpu_custom_call.1} parent=35 // pred_check_branch
          %365 = sbr.rel (%p363) target = $region56
        $region55: #{tpu_custom_call.1} parent=35 // pred_region
          %v366 = vld [vmem:[%s295] sm:$0xff]
          %v367 = vld [vmem:[%s304] sm:$0xff]
          %v368 = vld [vmem:[%s304 + $0x8] sm:$0xff]
          %v369 = vld [vmem:[%s304 + $0x10] sm:$0xff]
          %v370 = vld [vmem:[%s304 + $0x18] sm:$0xff]
          %vm371 = vcmask 261120
          %v373 = vsel %vm371, %v366, 0
          %375 = vmatprep.subr.mxu0 0.0
          %376 = vmatpush1.msra.mxu0 0.0
          %377 = vmatprep.subr.mxu0 0.0
          %378 = vmatpush1.msra.mxu0 0.0
          %379 = vmatprep.subr.mxu0 0.0
          %380 = vmatpush1.msra.mxu0 0.0
          %381 = vmatprep.subr.mxu0 0.0
          %382 = vmatpush1.msra.mxu0 0.0
          %383 = vmatprep.subr.mxu0 0.0
          %384 = vmatpush1.msra.mxu0 0.0
          %385 = vmatprep.subr.mxu0 0.0
          %386 = vmatpush1.msra.mxu0 0.0
          %387 = vmatprep.subr.mxu0 0.0
          %388 = vmatpush1.msra.mxu0 0.0
          %389 = vmatprep.subr.mxu0 0.0
          %390 = vmatpush1.msra.mxu0 0.0
          %391 = vmatprep.subr.mxu0 0.0
          %392 = vmatpush1.msra.mxu0 0.0
          %393 = vmatprep.subr.mxu0 0.0
          %394 = vmatpush1.msra.mxu0 0.0
          %395 = vmatprep.subr.mxu0 0.0
          %396 = vmatpush1.msra.mxu0 0.0
          %397 = vmatprep.subr.mxu0 0.0
          %398 = vmatpush1.msra.mxu0 0.0
          %399 = vmatprep.subr.mxu0 0.0
          %400 = vmatpush1.msra.mxu0 %v370
          %401 = vmatprep.subr.mxu0 0.0
          %402 = vmatpush1.msra.mxu0 %v369
          %403 = vmatprep.subr.mxu0 0.0
          %404 = vmatpush1.msra.mxu0 %v368
          %405 = vmatprep.subr.mxu0 0.0
          %406 = vmatpush1.msra.mxu0 %v367
          %407 = vmatprep.subr.mxu0 0.0
          %408 = vmatpush2.msra.mxu0 0.0
          %409 = vmatprep.subr.mxu0 0.0
          %410 = vmatpush2.msra.mxu0 0.0
          %411 = vmatprep.subr.mxu0 0.0
          %412 = vmatpush2.msra.mxu0 0.0
          %413 = vmatprep.subr.mxu0 0.0
          %414 = vmatpush2.msra.mxu0 0.0
          %415 = vmatprep.subr.mxu0 0.0
          %416 = vmatpush2.msra.mxu0 0.0
          %417 = vmatprep.subr.mxu0 0.0
          %418 = vmatpush2.msra.mxu0 0.0
          %419 = vmatprep.subr.mxu0 0.0
          %420 = vmatpush2.msra.mxu0 0.0
          %421 = vmatprep.subr.mxu0 0.0
          %422 = vmatpush2.msra.mxu0 0.0
          %423 = vmatprep.subr.mxu0 0.0
          %424 = vmatpush2.msra.mxu0 0.0
          %425 = vmatprep.subr.mxu0 0.0
          %426 = vmatpush2.msra.mxu0 0.0
          %427 = vmatprep.subr.mxu0 0.0
          %428 = vmatpush2.msra.mxu0 0.0
          %429 = vmatprep.subr.mxu0 0.0
          %430 = vmatpush2.msra.mxu0 0.0
          %431 = vmatprep.subr.mxu0 0.0
          %432 = vmatpush2.msra.mxu0 0.0
          %433 = vmatprep.subr.mxu0 0.0
          %434 = vmatpush2.msra.mxu0 0.0
          %435 = vmatprep.subr.mxu0 0.0
          %436 = vmatpush2.msra.mxu0 0.0
          %437 = vmatprep.subr.mxu0 0.0
          %438 = vmatpush2.msra.mxu0 0.0
          %439 = vmatprep.mubr.f32.mxu0 0.0
          %440 = vmatmul.mubr.f32.gmra.mxu0 %v373
          %v441 = vpop.f32.mrf.mxu0
          %v442 = vadd.f32 0.0, %v441
          %v443 = vpop.f32.mrf.mxu0
          %444 = vdwg.mxu0
          %445 = vst [vmem:[#allocation2] sm:$0xff] %v442
        $region56: #{tpu_custom_call.1} parent=35 // pred_fallthru
          _
        %v446 = vld [vmem:[%s313] sm:$0xff]
        %v447 = vld [vmem:[%s322] sm:$0xff]
        %v448 = vadd.f32 %v446, %v447
        %v449 = vld [vmem:[#allocation2] sm:$0xff]
        %v450 = vadd.f32 %v448, %v449
        %451 = vst [vmem:[%s361] sm:$0xff] %v450
        %s452 = sand.u32 %s170, 1
        %s453 = scalar_lea.sflag [#allocation5], %s452
        %s454 = sand.u32 %s170, 1
        %s455 = smul.addr %s454, 8
        %s456 = scalar_lea.vmem [#allocation11], %s455
        // Predicated region
        $region57: #{tpu_custom_call.1} parent=35 // pred_check
          %p457 = pneg %p180
        $region58: #{tpu_custom_call.1} parent=35 // pred_check_branch
          %459 = sbr.rel (%p457) target = $region60
        $region59: #{tpu_custom_call.1} parent=35 // pred_region
          %s461 = ssub.s32 128, 128
          %462 = vsyncadd %s453, %s461
          %s463 = smul.addr %s32, 2
          %s464 = sadd.s32 %s33, %s463
          %s465 = smul.addr %s34, 4
          %s466 = sadd.s32 %s464, %s465
          %s467 = smul.addr %s466, 128
          %s468 = scalar_lea.hbm %s4, %s467
          %s470 = sshll.u32 %s456, 4
          %s471 = int_to_ptr.vmem [resolvable:$true] %s470
          %473 = dma.vmem_to_hbm [thread:$0]  %s471, 128, %s468, %s453
        $region60: #{tpu_custom_call.1} parent=35 // pred_fallthru
          _
      $region36: #{tpu_custom_call.1} parent=5 // pred_fallthru
        _
      %p474 = scmp.le.s32.totalorder 2, %s22
      // Predicated region
      $region61: #{tpu_custom_call.1} parent=5 // pred_check
        %p475 = pneg %p474
      $region62: #{tpu_custom_call.1} parent=5 // pred_check_branch
        %477 = sbr.rel (%p475) target = $region64
      $region63: #{tpu_custom_call.1} parent=5 // pred_region
        %s478 = ssub.s32 %s22, 2
        // Predicated region
        $region65: #{tpu_custom_call.1} parent=63 // pred_check
          %p479 = pneg %p186
        $region66: #{tpu_custom_call.1} parent=63 // pred_check_branch
          %481 = sbr.rel (%p479) target = $region68
        $region67: #{tpu_custom_call.1} parent=63 // pred_region
          %s482 = sand.u32 %s171, 1
          %s483 = scalar_lea.sflag [#allocation5], %s482
          %s484 = sand.u32 %s171, 1
          %s485 = smul.addr %s484, 8
          %s486 = scalar_lea.vmem [#allocation11], %s485
          %487 = dma.done %s483, 128
        $region68: #{tpu_custom_call.1} parent=63 // pred_fallthru
          _
      $region64: #{tpu_custom_call.1} parent=5 // pred_fallthru
        _
    $region6: #{tpu_custom_call.1} parent=1 // loop_footer
      %s26 = sadd.s32 1, %s22
    $region7: #{tpu_custom_call.1} parent=1 // loop_footer_branch
      %21 = sbr.rel target = $region3
    $region8: #{tpu_custom_call.1} parent=1 // loop_exit
      _
    %488 = vsyncpa [#allocation4], 1
    %s489 = scalar_lea.sflag [#allocation4], 1
    %490 = vsyncpa %s489, 1
    %491 = vsyncpa [#allocation7], 1
    %s492 = scalar_lea.sflag [#allocation7], 1
    %493 = vsyncpa %s492, 1
    %494 = vsyncpa [#allocation10], 1
    %s495 = scalar_lea.sflag [#allocation10], 1
    %496 = vsyncpa %s495, 1
    %497 = vsyncpa [#allocation5], 1
    %s498 = scalar_lea.sflag [#allocation5], 1
    %499 = vsyncpa %s498, 1

</llo_original>
